<compile_context>
chip_gen: v7x
topology: tpu7x:2x2x1
jax: 0.10.0
libtpu: 0.0.40
codegen_flags: <defaults>
</compile_context>

<pallas_src>
import math

import jax
import jax.numpy as jnp
from jax.experimental import pallas as pl
from jax.experimental.pallas import tpu as pltpu

_EPS = 1e-11
_LOG_LO = math.log(_EPS)        # log(1e-11)
_LOG_HI = math.log1p(-_EPS)     # log(1 - 1e-11)


def _cdiv(a, b):
    return -(-a // b)


def _round_up(a, b):
    return _cdiv(a, b) * b


def _backward_t_loss_kernel(labels_ref, logits_ref, tinv_ref, out_ref, acc_ref):
    # labels_ref: (1, TILE_N) int32   (padded labels == C -> all-zero one-hot)
    # logits_ref: (C, TILE_N) f32     (classes on sublanes, samples on lanes)
    # tinv_ref:   (C, C)      f32
    # out_ref:    (8, 128)    f32     (per-part partial sum, splatted)
    # acc_ref:    (C, C)      f32     VMEM scratch accumulator
    i = pl.program_id(1)

    @pl.when(i == 0)
    def _init():
        acc_ref[...] = jnp.zeros_like(acc_ref)

    x = logits_ref[...]                                    # (C, T)

    # Numerically stable log-softmax over classes (sublane axis).
    xm = x - jnp.max(x, axis=0, keepdims=True)             # (C, T)
    lse = jnp.log(jnp.sum(jnp.exp(xm), axis=0, keepdims=True))  # (1, T)
    # clip in log space == clip(p, 1e-11, 1 - 1e-11) followed by log
    logp = jnp.clip(xm - lse, _LOG_LO, _LOG_HI)            # (C, T)

    # One-hot with classes on sublanes; padded labels (== C) give zero columns.
    class_ids = jax.lax.broadcasted_iota(jnp.int32, x.shape, 0)    # (C, T)
    one_hot = (class_ids == labels_ref[...]).astype(jnp.float32)   # (C, T)

    # S[k, c] = sum_t one_hot[k, t] * logp[c, t]  -- MXU matmul with K = TILE_N.
    # HIGHEST precision: keep logp at f32 accuracy inside the MXU passes.
    acc_ref[...] += jax.lax.dot_general(
        one_hot, logp,
        dimension_numbers=(((1,), (1,)), ((), ())),
        precision=jax.lax.Precision.HIGHEST,
        preferred_element_type=jnp.float32,
    )

    @pl.when(i == pl.num_programs(1) - 1)
    def _finalize():
        partial = jnp.sum(tinv_ref[...] * acc_ref[...])    # scalar
        out_ref[...] = jnp.zeros_like(out_ref) + partial   # splat; wrapper reads [0, 0]


def backward_t_loss(y_pred, y_true, t_inv, *, tile_n=8192, num_parts=2):
    """y_pred: (N, C) f32 logits, y_true: (N,) int labels, t_inv: (C, C) f32."""
    n, c = y_pred.shape

    # Pick the biggest sample tile that keeps a logits buffer under ~4 MiB
    # (sublane-padded), so per-grid-step overhead is amortized.
    sublanes = _round_up(c, 8)
    vmem_cap = max(128, ((4 * 1024 * 1024) // (sublanes * 4) // 128) * 128)
    tile_n = max(128, min(_round_up(tile_n, 128), vmem_cap, _round_up(n, 128)))

    total_tiles = _cdiv(n, tile_n)
    num_parts = max(1, min(num_parts, total_tiles))
    tiles_per_part = _cdiv(total_tiles, num_parts)
    n_pad = num_parts * tiles_per_part * tile_n
    pad = n_pad - n

    # Layout plumbing (wrapper side): classes -> sublanes, samples -> lanes,
    # padded so the grid covers the array exactly (no ragged / OOB blocks).
    # TODO(synk): the (N,C)->(C,N) transpose is one extra HBM round-trip; for
    # very large N an in-kernel strided-DMA transpose would remove it.
    logits_t = jnp.pad(y_pred.astype(jnp.float32).T, ((0, 0), (0, pad)))
    labels_row = jnp.pad(
        y_true.astype(jnp.int32).reshape(1, n), ((0, 0), (0, pad)),
        constant_values=c)

    grid = (num_parts, tiles_per_part)

    partials = pl.pallas_call(
        _backward_t_loss_kernel,
        out_shape=jax.ShapeDtypeStruct((num_parts * 8, 128), jnp.float32),
        grid_spec=pltpu.PrefetchScalarGridSpec(
            num_scalar_prefetch=0,
            grid=grid,
            in_specs=[
                pl.BlockSpec((1, tile_n),
                             lambda p, i: (0, p * tiles_per_part + i)),
                pl.BlockSpec((c, tile_n),
                             lambda p, i: (0, p * tiles_per_part + i)),
                pl.BlockSpec((c, c), lambda p, i: (0, 0)),
            ],
            out_specs=pl.BlockSpec((8, 128), lambda p, i: (p, 0)),
            scratch_shapes=[pltpu.VMEM((c, c), jnp.float32)],
        ),
        compiler_params=pltpu.CompilerParams(
            dimension_semantics=("parallel", "arbitrary"),
            vmem_limit_bytes=32 * 1024 * 1024,
        ),
    )(labels_row, logits_t, t_inv.astype(jnp.float32))

    # Each part's (8, 128) block is a splat of its partial sum.
    per_part = partials.reshape(num_parts, 8, 128)[:, 0, 0]
    return -jnp.sum(per_part) / jnp.float32(n)


def _reference(y_pred, y_true, t_inv):
    c = t_inv.shape[0]
    one_hot = jax.nn.one_hot(y_true, c, dtype=jnp.float32)
    p = jax.nn.softmax(y_pred.astype(jnp.float32), axis=-1)
    p = p / jnp.sum(p, axis=-1, keepdims=True)
    p = jnp.clip(p, 1e-11, 1.0 - 1e-11)
    return -jnp.mean(jnp.sum((one_hot @ t_inv) * jnp.log(p), axis=-1))


if __name__ == "__main__":
    key = jax.random.PRNGKey(0)
    k1, k2 = jax.random.split(key, 2)

    n_classes = 4
    batch = 300   # small, but exercises multiple tiles, both parts, and padding

    # Deterministic noise-transition matrix T, then T_inv = inv(T) as in the
    # module's __init__ (plain JAX glue, not part of the kernel).
    noise = 0.2
    T = (1.0 - noise) * jnp.eye(n_classes, dtype=jnp.float32) + (
        noise / (n_classes - 1)
    ) * (jnp.ones((n_classes, n_classes), jnp.float32)
         - jnp.eye(n_classes, dtype=jnp.float32))
    T_inv = jnp.linalg.inv(T)

    y_pred = jax.random.normal(k1, (batch, n_classes), dtype=jnp.float32)
    y_true = jax.random.randint(k2, (batch,), 0, n_classes, dtype=jnp.int32)

    ref = _reference(y_pred, y_true, T_inv)

    # Multi-tile path: tile_n=128 / num_parts=2 -> grid (2, 2) + padded last tile.
    loss_small = backward_t_loss(y_pred, y_true, T_inv, tile_n=128, num_parts=2)
    loss_small = jax.block_until_ready(loss_small)
    assert jnp.allclose(loss_small, ref, atol=1e-5, rtol=1e-5), (loss_small, ref)

    # Default (single-tile) path.
    loss_def = backward_t_loss(y_pred, y_true, T_inv)
    loss_def = jax.block_until_ready(loss_def)
    assert jnp.allclose(loss_def, ref, atol=1e-5, rtol=1e-5), (loss_def, ref)

    print("KERNEL_OK")
</pallas_src>

<mosaic_0001>
module attributes {stable_mosaic.version = 11 : i64} {
  func.func @_backward_t_loss_kernel(%arg0: i32, %arg1: i32, %arg2: memref<1x128xi32, #tpu.memory_space<vmem>>, %arg3: memref<4x128xf32, #tpu.memory_space<vmem>>, %arg4: memref<4x4xf32, #tpu.memory_space<vmem>>, %arg5: memref<8x128xf32, #tpu.memory_space<vmem>>, %arg6: memref<4x4xf32, #tpu.memory_space<vmem>>) attributes {dimension_semantics = [#tpu.dimension_semantics<parallel>, #tpu.dimension_semantics<arbitrary>], iteration_bounds = array<i64: 2, 2>, scalar_prefetch = 0 : i64, scratch_operands = 1 : i64, tpu.core_type = #tpu.core_type<tc>, window_params = [{transform_indices = @transform_0, window_bounds = array<i64: 1, 128>}, {transform_indices = @transform_1, window_bounds = array<i64: 4, 128>}, {pipeline_mode = #tpu.pipeline_mode<synchronous>, transform_indices = @transform_2, window_bounds = array<i64: 4, 4>}, {transform_indices = @transform_3, window_bounds = array<i64: 8, 128>}]} {
    %c0_i32 = arith.constant 0 : i32
    %0 = arith.cmpi eq, %arg1, %c0_i32 : i32
    %1 = arith.extui %0 : i1 to i32
    %c0_i32_0 = arith.constant 0 : i32
    %2 = arith.cmpi ne, %1, %c0_i32_0 : i32
    scf.if %2 {
      %cst_13 = arith.constant 0.000000e+00 : f32
      %31 = vector.broadcast %cst_13 : f32 to vector<4x4xf32>
      %c0_14 = arith.constant 0 : index
      %c0_15 = arith.constant 0 : index
      %32 = vector.load %arg6[%c0_14, %c0_15] : memref<4x4xf32, #tpu.memory_space<vmem>>, vector<4x4xf32>
      tpu.vector_store %arg6[%c0_14, %c0_15], %31 {strides = array<i32>} : memref<4x4xf32, #tpu.memory_space<vmem>>, vector<4x4xf32>,
    } else {
    }
    %c0 = arith.constant 0 : index
    %c0_1 = arith.constant 0 : index
    %3 = vector.load %arg3[%c0, %c0_1] : memref<4x128xf32, #tpu.memory_space<vmem>>, vector<4x128xf32>
    %cst = arith.constant dense<0xFF800000> : vector<128xf32>
    %4 = vector.multi_reduction <maximumf>, %3, %cst [0] : vector<4x128xf32> to vector<128xf32>
    %5 = vector.shape_cast %4 : vector<128xf32> to vector<1x128xf32>
    %6 = vector.broadcast %5 : vector<1x128xf32> to vector<4x128xf32>
    %7 = arith.subf %3, %6 : vector<4x128xf32>
    %8 = math.exp %7 : vector<4x128xf32>
    %cst_2 = arith.constant dense<0.000000e+00> : vector<128xf32>
    %9 = vector.multi_reduction <add>, %8, %cst_2 [0] : vector<4x128xf32> to vector<128xf32>
    %10 = vector.shape_cast %9 : vector<128xf32> to vector<1x128xf32>
    %11 = math.log %10 : vector<1x128xf32>
    %12 = vector.broadcast %11 : vector<1x128xf32> to vector<4x128xf32>
    %13 = arith.subf %7, %12 : vector<4x128xf32>
    %cst_3 = arith.constant -25.3284359 : f32
    %cst_4 = arith.constant -9.99999996E-12 : f32
    %14 = vector.broadcast %cst_3 : f32 to vector<4x128xf32>
    %15 = arith.maximumf %14, %13 : vector<4x128xf32>
    %16 = vector.broadcast %cst_4 : f32 to vector<4x128xf32>
    %17 = arith.minimumf %16, %15 : vector<4x128xf32>
    %18 = tpu.iota {dimensions = array<i32: 0>} : vector<4x128xi32>
    %c0_5 = arith.constant 0 : index
    %c0_6 = arith.constant 0 : index
    %19 = vector.load %arg2[%c0_5, %c0_6] : memref<1x128xi32, #tpu.memory_space<vmem>>, vector<1x128xi32>
    %20 = vector.broadcast %19 : vector<1x128xi32> to vector<4x128xi32>
    %21 = arith.cmpi eq, %18, %20 : vector<4x128xi32>
    %22 = arith.extui %21 : vector<4x128xi1> to vector<4x128xi32>
    %23 = arith.sitofp %22 : vector<4x128xi32> to vector<4x128xf32>
    %c0_7 = arith.constant 0 : index
    %c0_8 = arith.constant 0 : index
    %24 = vector.load %arg6[%c0_7, %c0_8] : memref<4x4xf32, #tpu.memory_space<vmem>>, vector<4x4xf32>
    %cst_9 = arith.constant dense<0.000000e+00> : vector<4x4xf32>
    %25 = tpu.matmul %23, %17, %cst_9 {dimension_numbers = #tpu.dot_dimension_numbers<[1], [1], [0], [0], [0, 0, 1, 0], [], []>, precision = #tpu.contract_precision<fp32>} : vector<4x128xf32>, vector<4x128xf32>, vector<4x4xf32> -> vector<4x4xf32>
    %26 = arith.addf %24, %25 : vector<4x4xf32>
    %c0_10 = arith.constant 0 : index
    %c0_11 = arith.constant 0 : index
    %27 = vector.load %arg6[%c0_10, %c0_11] : memref<4x4xf32, #tpu.memory_space<vmem>>, vector<4x4xf32>
    tpu.vector_store %arg6[%c0_10, %c0_11], %26 {strides = array<i32>} : memref<4x4xf32, #tpu.memory_space<vmem>>, vector<4x4xf32>,
    %c1_i32 = arith.constant 1 : i32
    %28 = arith.cmpi eq, %arg1, %c1_i32 : i32
    %29 = arith.extui %28 : i1 to i32
    %c0_i32_12 = arith.constant 0 : i32
    %30 = arith.cmpi ne, %29, %c0_i32_12 : i32
    scf.if %30 {
      %c0_13 = arith.constant 0 : index
      %c0_14 = arith.constant 0 : index
      %31 = vector.load %arg4[%c0_13, %c0_14] : memref<4x4xf32, #tpu.memory_space<vmem>>, vector<4x4xf32>
      %c0_15 = arith.constant 0 : index
      %c0_16 = arith.constant 0 : index
      %32 = vector.load %arg6[%c0_15, %c0_16] : memref<4x4xf32, #tpu.memory_space<vmem>>, vector<4x4xf32>
      %33 = arith.mulf %31, %32 : vector<4x4xf32>
      %34 = vector.shape_cast %33 : vector<4x4xf32> to vector<1x4x4xf32>
      %cst_17 = arith.constant dense<0.000000e+00> : vector<1xf32>
      %35 = vector.multi_reduction <add>, %34, %cst_17 [1, 2] : vector<1x4x4xf32> to vector<1xf32>
      %36 = vector.shape_cast %35 : vector<1xf32> to vector<1x1x1xf32>
      %37 = vector.extract %36[0, 0, 0] : f32 from vector<1x1x1xf32>
      %cst_18 = arith.constant 0.000000e+00 : f32
      %38 = vector.broadcast %cst_18 : f32 to vector<8x128xf32>
      %39 = vector.broadcast %37 : f32 to vector<8x128xf32>
      %40 = arith.addf %38, %39 : vector<8x128xf32>
      %c0_19 = arith.constant 0 : index
      %c0_20 = arith.constant 0 : index
      %41 = vector.load %arg5[%c0_19, %c0_20] : memref<8x128xf32, #tpu.memory_space<vmem>>, vector<8x128xf32>
      tpu.vector_store %arg5[%c0_19, %c0_20], %40 {strides = array<i32>} : memref<8x128xf32, #tpu.memory_space<vmem>>, vector<8x128xf32>,
    } else {
    }
    return
  }
  func.func @transform_0(%arg0: i32, %arg1: i32) -> (i32, i32) {
    %c2_i32 = arith.constant 2 : i32
    %0 = arith.muli %arg0, %c2_i32 : i32
    %1 = arith.addi %0, %arg1 : i32
    %c0_i32 = arith.constant 0 : i32
    %c0_i32_0 = arith.constant 0 : i32
    return %c0_i32, %1 : i32, i32
  }
  func.func @transform_1(%arg0: i32, %arg1: i32) -> (i32, i32) {
    %c2_i32 = arith.constant 2 : i32
    %0 = arith.muli %arg0, %c2_i32 : i32
    %1 = arith.addi %0, %arg1 : i32
    %c0_i32 = arith.constant 0 : i32
    %c0_i32_0 = arith.constant 0 : i32
    return %c0_i32, %1 : i32, i32
  }
  func.func @transform_2(%arg0: i32, %arg1: i32) -> (i32, i32) {
    %c0_i32 = arith.constant 0 : i32
    %c0_i32_0 = arith.constant 0 : i32
    %c0_i32_1 = arith.constant 0 : i32
    return %c0_i32, %c0_i32_0 : i32, i32
  }
  func.func @transform_3(%arg0: i32, %arg1: i32) -> (i32, i32) {
    %c0_i32 = arith.constant 0 : i32
    %c0_i32_0 = arith.constant 0 : i32
    return %arg0, %c0_i32 : i32, i32
  }
}

</mosaic_0001>

<llo_original>
// kernel: tpu_custom_call.1
$region0: #{tpu_custom_call.1}
  #allocation0 [shape = 'u32[]', space=smem, size = 0x4, offset = 0x4, fixed_abs, tag = 'smem constant byte address 0x4 - core index']
  #allocation1 [shape = 'u32[144,128]{1,0:T(1,128)}', space=vmem, size = 0x12000, scoped, tag = 'internal scratch']
  #allocation2 [shape = 'f32[4,4]{1,0:T(4,128)}', space=vmem, size = 0x800, scoped, tag = 'scratch operand']
  %s0 = inlined_call_operand.hbm [shape: s32[1,512], index: 0, kind: input, shape index: {}]
  %s1 = inlined_call_operand.hbm [shape: f32[4,512], index: 1, kind: input, shape index: {}]
  %s2 = inlined_call_operand.vmem [shape: f32[4,4], index: 2, kind: input, shape index: {}]
  %s3 = inlined_call_operand.hbm [shape: f32[16,128], index: 3, kind: output, shape index: {}]
  %s4 = sld [smem:[#allocation0]]
  $region61: #{tpu_custom_call.1} parent=0
    _
  %s6 = ssub.s32 1, %s4
  %s7 = scalar_select 0, %s6, %s4
  $region1: #{tpu_custom_call.1} parent=0
    #allocation3 [shape = 'u8[1024]{0}', space=vmem, size = 0x400, scoped, tag = 'input window, operand 0']
    #allocation4 [shape = 's32[2]{0}', space=sflag, size = 0x8, scoped, tag = 'scoped memory for tpu_custom_call.1']
    #allocation5 [shape = 's32[2]{0}', space=sflag, size = 0x8, scoped, tag = 'scoped memory for tpu_custom_call.1']
    #allocation6 [shape = 'u8[4096]{0}', space=vmem, size = 0x1000, scoped, tag = 'input window, operand 1']
    #allocation7 [shape = 's32[2]{0}', space=sflag, size = 0x8, scoped, tag = 'scoped memory for tpu_custom_call.1']
    #allocation8 [shape = 'u8[8192]{0}', space=vmem, size = 0x2000, scoped, tag = 'output window, operand 0']
    %8 = vsyncpa [#allocation4], 0
    %s9 = scalar_lea.sflag [#allocation4], 1
    %10 = vsyncpa %s9, 0
    %11 = vsyncpa [#allocation7], 0
    %s12 = scalar_lea.sflag [#allocation7], 1
    %13 = vsyncpa %s12, 0
    %14 = vsyncpa [#allocation5], 0
    %s15 = scalar_lea.sflag [#allocation5], 1
    %16 = vsyncpa %s15, 0
    loop: start=0, step=1, limit=6
    $region2: #{tpu_custom_call.1} parent=1 // loop_pre_header
      _
    $region3: #{tpu_custom_call.1} parent=1 // loop_header
      %s18 = sphi 0, %s22
      %p19 = scmp.ge.s32.totalorder %s18, 6
      %s25 = sphi 0, %s37
      %s26 = sphi 0, %s33
      %s27 = sphi 0, %s25
      %s28 = sphi 0, %s26
      %s29 = sphi 0, %s27
      %s30 = sphi 0, %s28
      %s44 = sphi 0, %s46
      %s47 = sphi 0, %s44
      %s48 = sphi 0, %s47
      %s64 = sphi 0, %s48
      %s74 = sphi 0, %s76
      %s77 = sphi 0, %s74
      %s78 = sphi 0, %s77
      %s94 = sphi 0, %s78
      %s98 = sphi 0, %s98
      %s100 = sphi 0, %s98
      %s101 = sphi 0, %s100
      %s115 = sphi 0, %s101
      %s121 = sphi 0, %s123
      %s124 = sphi 0, %s121
      %s125 = sphi 0, %s124
      %s141 = sphi 0, %s125
    $region4: #{tpu_custom_call.1} parent=1 // loop_header_branch
      %21 = sbr.rel (%p19) target = $region8
    $region5: #{tpu_custom_call.1} parent=1 // loop_body
      %s23 = ssub.s32 %s18, 1
      %s24 = ssub.s32 %s18, 2
      %s31 = sadd.s32 1, %s26
      %p32 = scmp.ge.s32.totalorder %s31, 2
      %s33 = scalar_select %p32, 0, %s31
      %s34 = sadd.s32 1, %s25
      %s35 = scalar_select %p32, %s34, %s25
      %p36 = scmp.ge.s32.totalorder %s35, 2
      %s37 = scalar_select %p36, 0, %s35
      %s38 = smul.u32 %s25, 2
      %s39 = sadd.s32 %s38, %s26
      %s40 = smul.u32 %s37, 2
      %s41 = sadd.s32 %s40, %s33
      %s42 = ssub.s32 %s39, %s41
      %p43 = scmp.eq.s32.totalorder %s42, 0
      %s45 = sadd.s32 %s44, 1
      %s46 = scalar_select %p43, %s44, %s45
      %p49 = pneg %p43
      %p50 = scmp.eq.s32.totalorder %s18, 3
      %p51 = por %p49, %p50
      %p52 = scmp.ne.s32.totalorder %s44, %s47
      %p53 = scmp.eq.s32.totalorder %s18, 0
      %p54 = por %p52, %p53
      %p55 = scmp.ne.s32.totalorder %s44, %s47
      %p56 = scmp.eq.s32.totalorder %s23, 3
      %p57 = por %p55, %p56
      %p58 = scmp.ne.s32.totalorder %s47, %s48
      %p59 = scmp.eq.s32.totalorder %s23, 0
      %p60 = por %p58, %p59
      %p61 = scmp.ne.s32.totalorder %s47, %s48
      %p62 = scmp.eq.s32.totalorder %s24, 3
      %p63 = por %p61, %p62
      %p65 = scmp.ne.s32.totalorder %s48, %s64
      %p66 = scmp.eq.s32.totalorder %s24, 0
      %p67 = por %p65, %p66
      %s68 = smul.u32 %s25, 2
      %s69 = sadd.s32 %s68, %s26
      %s70 = smul.u32 %s37, 2
      %s71 = sadd.s32 %s70, %s33
      %s72 = ssub.s32 %s69, %s71
      %p73 = scmp.eq.s32.totalorder %s72, 0
      %s75 = sadd.s32 %s74, 1
      %s76 = scalar_select %p73, %s74, %s75
      %p79 = pneg %p73
      %p80 = scmp.eq.s32.totalorder %s18, 3
      %p81 = por %p79, %p80
      %p82 = scmp.ne.s32.totalorder %s74, %s77
      %p83 = scmp.eq.s32.totalorder %s18, 0
      %p84 = por %p82, %p83
      %p85 = scmp.ne.s32.totalorder %s74, %s77
      %p86 = scmp.eq.s32.totalorder %s23, 3
      %p87 = por %p85, %p86
      %p88 = scmp.ne.s32.totalorder %s77, %s78
      %p89 = scmp.eq.s32.totalorder %s23, 0
      %p90 = por %p88, %p89
      %p91 = scmp.ne.s32.totalorder %s77, %s78
      %p92 = scmp.eq.s32.totalorder %s24, 3
      %p93 = por %p91, %p92
      %p95 = scmp.ne.s32.totalorder %s78, %s94
      %p96 = scmp.eq.s32.totalorder %s24, 0
      %p97 = por %p95, %p96
      %s99 = sadd.s32 %s98, 1
      %p102 = scmp.eq.s32.totalorder %s18, 3
      %p103 = scmp.ne.s32.totalorder %s98, %s100
      %p104 = scmp.eq.s32.totalorder %s18, 0
      %p105 = por %p103, %p104
      %p106 = scmp.ne.s32.totalorder %s98, %s100
      %p107 = scmp.eq.s32.totalorder %s23, 3
      %p108 = por %p106, %p107
      %p109 = scmp.ne.s32.totalorder %s100, %s101
      %p110 = scmp.eq.s32.totalorder %s23, 0
      %p111 = por %p109, %p110
      %p112 = scmp.ne.s32.totalorder %s100, %s101
      %p113 = scmp.eq.s32.totalorder %s24, 3
      %p114 = por %p112, %p113
      %p116 = scmp.ne.s32.totalorder %s101, %s115
      %p117 = scmp.eq.s32.totalorder %s24, 0
      %p118 = por %p116, %p117
      %s119 = ssub.s32 %s25, %s37
      %p120 = scmp.eq.s32.totalorder %s119, 0
      %s122 = sadd.s32 %s121, 1
      %s123 = scalar_select %p120, %s121, %s122
      %p126 = pneg %p120
      %p127 = scmp.eq.s32.totalorder %s18, 3
      %p128 = por %p126, %p127
      %p129 = scmp.ne.s32.totalorder %s121, %s124
      %p130 = scmp.eq.s32.totalorder %s18, 0
      %p131 = por %p129, %p130
      %p132 = scmp.ne.s32.totalorder %s121, %s124
      %p133 = scmp.eq.s32.totalorder %s23, 3
      %p134 = por %p132, %p133
      %p135 = scmp.ne.s32.totalorder %s124, %s125
      %p136 = scmp.eq.s32.totalorder %s23, 0
      %p137 = por %p135, %p136
      %p138 = scmp.ne.s32.totalorder %s124, %s125
      %p139 = scmp.eq.s32.totalorder %s24, 3
      %p140 = por %p138, %p139
      %p142 = scmp.ne.s32.totalorder %s125, %s141
      %p143 = scmp.eq.s32.totalorder %s24, 0
      %p144 = por %p142, %p143
      %p145 = scmp.le.s32.totalorder 1, %s18
      %p146 = scmp.lt.s32.totalorder %s18, 5
      %p147 = pnand %p145, %p146
      %p148 = pneg %p147
      // Predicated region
      $region9: #{tpu_custom_call.1} parent=5 // pred_check
        _
      $region10: #{tpu_custom_call.1} parent=5 // pred_check_branch
        %150 = sbr.rel (%p147) target = $region12
      $region11: #{tpu_custom_call.1} parent=5 // pred_region
        %s151 = ssub.s32 %s18, 1
        // Predicated region
        $region13: #{tpu_custom_call.1} parent=11 // pred_check
          %p152 = pneg %p111
        $region14: #{tpu_custom_call.1} parent=11 // pred_check_branch
          %154 = sbr.rel (%p152) target = $region16
        $region15: #{tpu_custom_call.1} parent=11 // pred_region
          _
        $region16: #{tpu_custom_call.1} parent=11 // pred_fallthru
          _
      $region12: #{tpu_custom_call.1} parent=5 // pred_fallthru
        _
      %p155 = scmp.lt.s32.totalorder %s18, 4
      // Predicated region
      $region17: #{tpu_custom_call.1} parent=5 // pred_check
        %p156 = pneg %p155
      $region18: #{tpu_custom_call.1} parent=5 // pred_check_branch
        %158 = sbr.rel (%p156) target = $region20
      $region19: #{tpu_custom_call.1} parent=5 // pred_region
        // Predicated region
        $region21: #{tpu_custom_call.1} parent=19 // pred_check
          %p159 = pneg %p54
        $region22: #{tpu_custom_call.1} parent=19 // pred_check_branch
          %161 = sbr.rel (%p159) target = $region24
        $region23: #{tpu_custom_call.1} parent=19 // pred_region
          %s162 = sand.u32 %s44, 1
          %s163 = scalar_lea.sflag [#allocation4], %s162
          %s164 = sand.u32 %s44, 1
          %s165 = scalar_lea.vmem [#allocation3], %s164
          %s166 = smul.u32 %s25, 2
          %s167 = sadd.s32 %s166, %s26
          %s169 = ssub.s32 16, 16
          %170 = vsyncadd %s163, %s169
          %s171 = smul.addr %s167, 16
          %s172 = scalar_lea.hbm %s0, %s171
          %s174 = sshll.u32 %s165, 4
          %s175 = int_to_ptr.vmem [resolvable:$true] %s174
          %177 = dma.hbm_to_vmem [thread:$0]  %s172, 16, %s175, %s163
        $region24: #{tpu_custom_call.1} parent=19 // pred_fallthru
          _
        // Predicated region
        $region25: #{tpu_custom_call.1} parent=19 // pred_check
          %p178 = pneg %p84
        $region26: #{tpu_custom_call.1} parent=19 // pred_check_branch
          %180 = sbr.rel (%p178) target = $region28
        $region27: #{tpu_custom_call.1} parent=19 // pred_region
          %s181 = sand.u32 %s74, 1
          %s182 = scalar_lea.sflag [#allocation7], %s181
          %s183 = sand.u32 %s74, 1
          %s184 = smul.addr %s183, 4
          %s185 = scalar_lea.vmem [#allocation6], %s184
          %s186 = smul.u32 %s25, 2
          %s187 = sadd.s32 %s186, %s26
          %s189 = ssub.s32 64, 64
          %190 = vsyncadd %s182, %s189
          %s191 = smul.addr %s187, 64
          %s192 = scalar_lea.hbm %s1, %s191
          %s194 = sshll.u32 %s185, 4
          %s195 = int_to_ptr.vmem [resolvable:$true] %s194
          %197 = dma.hbm_to_vmem [thread:$0]  %s192, 64, %s195, %s182
        $region28: #{tpu_custom_call.1} parent=19 // pred_fallthru
          _
      $region20: #{tpu_custom_call.1} parent=5 // pred_fallthru
        _
      %p198 = scmp.le.s32.totalorder 1, %s18
      %p199 = scmp.lt.s32.totalorder %s18, 5
      %p200 = pnand %p198, %p199
      %p201 = pneg %p200
      // Predicated region
      $region29: #{tpu_custom_call.1} parent=5 // pred_check
        _
      $region30: #{tpu_custom_call.1} parent=5 // pred_check_branch
        %203 = sbr.rel (%p200) target = $region32
      $region31: #{tpu_custom_call.1} parent=5 // pred_region
        %s204 = ssub.s32 %s18, 1
        %s205 = sand.u32 %s47, 1
        %s206 = scalar_lea.sflag [#allocation4], %s205
        %s207 = sand.u32 %s47, 1
        %s208 = scalar_lea.vmem [#allocation3], %s207
        // Predicated region
        $region33: #{tpu_custom_call.1} parent=31 // pred_check
          %p209 = pneg %p60
        $region34: #{tpu_custom_call.1} parent=31 // pred_check_branch
          %211 = sbr.rel (%p209) target = $region36
        $region35: #{tpu_custom_call.1} parent=31 // pred_region
          %212 = dma.done %s206, 16
        $region36: #{tpu_custom_call.1} parent=31 // pred_fallthru
          _
        %s213 = sand.u32 %s77, 1
        %s214 = scalar_lea.sflag [#allocation7], %s213
        %s215 = sand.u32 %s77, 1
        %s216 = smul.addr %s215, 4
        %s217 = scalar_lea.vmem [#allocation6], %s216
        // Predicated region
        $region37: #{tpu_custom_call.1} parent=31 // pred_check
          %p218 = pneg %p90
        $region38: #{tpu_custom_call.1} parent=31 // pred_check_branch
          %220 = sbr.rel (%p218) target = $region40
        $region39: #{tpu_custom_call.1} parent=31 // pred_region
          %221 = dma.done %s214, 64
        $region40: #{tpu_custom_call.1} parent=31 // pred_fallthru
          _
        %s222 = sand.u32 %s47, 1
        %s223 = scalar_lea.sflag [#allocation4], %s222
        %s224 = sand.u32 %s47, 1
        %s225 = scalar_lea.vmem [#allocation3], %s224
        %p226 = pneg %p60
        %p227 = pneg %p57
        %s228 = sand.u32 %s77, 1
        %s229 = scalar_lea.sflag [#allocation7], %s228
        %s230 = sand.u32 %s77, 1
        %s231 = smul.addr %s230, 4
        %s232 = scalar_lea.vmem [#allocation6], %s231
        %p233 = pneg %p90
        %p234 = pneg %p87
        %p235 = pneg %p111
        %p236 = pneg %p108
        %p237 = pneg %p137
        %p238 = pneg %p134
        %s239 = sand.u32 %s124, 1
        %s240 = scalar_lea.sflag [#allocation5], %s239
        %s241 = sand.u32 %s124, 1
        %s242 = smul.addr %s241, 8
        %s243 = scalar_lea.vmem [#allocation8], %s242
        %s244 = smul.u32 %s27, 2
        %s245 = sadd.s32 %s244, %s28
        %s246 = smul.u32 %s27, 2
        %s247 = sadd.s32 %s246, %s28
        %p248 = scmp.eq.s32.totalorder %s28, 0
        // Predicated region
        $region41: #{tpu_custom_call.1} parent=31 // pred_check
          %p249 = pneg %p248
        $region42: #{tpu_custom_call.1} parent=31 // pred_check_branch
          %251 = sbr.rel (%p249) target = $region44
        $region43: #{tpu_custom_call.1} parent=31 // pred_region
          %vm252 = vcmask 27648
          %253 = vst.msk [vmem:[#allocation2] sm:$0xf] %vm252, 0.0
        $region44: #{tpu_custom_call.1} parent=31 // pred_fallthru
          _
        %v254 = vld [vmem:[%s217] sm:$0xf]
        %vm255 = vcmask 1043456
        %v256 = vsel %vm255, %v254, -inf
        %v257 = vrot.slane %v256, 4
        %v258 = vmax.f32 %v256, %v257
        %v259 = vrot.slane %v258, 2
        %v260 = vmax.f32 %v258, %v259
        %v261 = vrot.slane %v260, 1
        %v262 = vmax.f32 %v260, %v261
        %v263 = vsub.f32 %v254, %v262
        %v264 = vmul.f32 %v263, 1.442695
        %v265 = vpow.pop %v264
        %v266 = vsel %vm255, %v265, 0.0
        %v267 = vrot.slane %v266, 4
        %v268 = vadd.f32 %v266, %v267
        %v269 = vrot.slane %v268, 2
        %v270 = vadd.f32 %v268, %v269
        %v271 = vrot.slane %v270, 1
        %v272 = vadd.f32 %v270, %v271
        %v273 = vlog2.pop %v272
        %v274 = vmul.f32 %v273, 0.6931472
        %v275 = vsub.f32 %v263, %v274
        %v276 = vmax.f32 %v275, -25.328436
        %v277 = vmin.f32 %v276, -1e-11
        %v278 = vlaneseq
        %v279 = vshrl.u32 %v278, 7
        %v280 = vld [vmem:[%s208] sm:$0x1]
        %v281 = vlaneseq
        %v282 = vshrl.u32 %v281, 7
        %v283 = vsub.s32 0, %v282
        %v284 = vrot.slane %v280, %v283
        %vm285 = vcmp.eq.s32.totalorder %v279, %v284
        %v286 = vsel %vm285, 1, 0
        %v287 = vcvt.s32.f32 %v286
        %v288 = vld [vmem:[#allocation2] sm:$0xf]
        %289 = vmatprep.subr.mxu0 0.0
        %v290 = vand.u32 %v277, 4294901760
        %291 = vmatpush1.xpose.msra.mxu0 %v290
        %292 = vmatprep.subr.mxu0 0.0
        %293 = vmatpush1.xpose.msra.mxu0 0.0
        %294 = vmatprep.subr.mxu0 0.0
        %295 = vmatpush1.xpose.msra.mxu0 0.0
        %296 = vmatprep.subr.mxu0 0.0
        %297 = vmatpush1.xpose.msra.mxu0 0.0
        %298 = vmatprep.subr.mxu0 0.0
        %299 = vmatpush1.xpose.msra.mxu0 0.0
        %300 = vmatprep.subr.mxu0 0.0
        %301 = vmatpush1.xpose.msra.mxu0 0.0
        %302 = vmatprep.subr.mxu0 0.0
        %303 = vmatpush1.xpose.msra.mxu0 0.0
        %304 = vmatprep.subr.mxu0 0.0
        %305 = vmatpush1.xpose.msra.mxu0 0.0
        %306 = vmatprep.subr.mxu0 0.0
        %307 = vmatpush1.xpose.msra.mxu0 0.0
        %308 = vmatprep.subr.mxu0 0.0
        %309 = vmatpush1.xpose.msra.mxu0 0.0
        %310 = vmatprep.subr.mxu0 0.0
        %311 = vmatpush1.xpose.msra.mxu0 0.0
        %312 = vmatprep.subr.mxu0 0.0
        %313 = vmatpush1.xpose.msra.mxu0 0.0
        %314 = vmatprep.subr.mxu0 0.0
        %315 = vmatpush1.xpose.msra.mxu0 0.0
        %316 = vmatprep.subr.mxu0 0.0
        %317 = vmatpush1.xpose.msra.mxu0 0.0
        %318 = vmatprep.subr.mxu0 0.0
        %319 = vmatpush1.xpose.msra.mxu0 0.0
        %320 = vmatprep.subr.mxu0 0.0
        %321 = vmatpush1.xpose.msra.mxu0 0.0
        %322 = vmatprep.subr.mxu0 0.0
        %323 = vmatpush1.xpose.msra.mxu0 0.0
        %324 = vmatprep.subr.mxu0 0.0
        %325 = vmatpush1.xpose.msra.mxu0 0.0
        %326 = vmatprep.subr.mxu0 0.0
        %327 = vmatpush1.xpose.msra.mxu0 0.0
        %328 = vmatprep.subr.mxu0 0.0
        %329 = vmatpush1.xpose.msra.mxu0 0.0
        %330 = vmatprep.subr.mxu0 0.0
        %331 = vmatpush1.xpose.msra.mxu0 0.0
        %332 = vmatprep.subr.mxu0 0.0
        %333 = vmatpush1.xpose.msra.mxu0 0.0
        %334 = vmatprep.subr.mxu0 0.0
        %335 = vmatpush1.xpose.msra.mxu0 0.0
        %336 = vmatprep.subr.mxu0 0.0
        %337 = vmatpush1.xpose.msra.mxu0 0.0
        %338 = vmatprep.subr.mxu0 0.0
        %339 = vmatpush1.xpose.msra.mxu0 0.0
        %340 = vmatprep.subr.mxu0 0.0
        %341 = vmatpush1.xpose.msra.mxu0 0.0
        %342 = vmatprep.subr.mxu0 0.0
        %343 = vmatpush1.xpose.msra.mxu0 0.0
        %344 = vmatprep.subr.mxu0 0.0
        %345 = vmatpush1.xpose.msra.mxu0 0.0
        %346 = vmatprep.subr.mxu0 0.0
        %347 = vmatpush1.xpose.msra.mxu0 0.0
        %348 = vmatprep.subr.mxu0 0.0
        %349 = vmatpush1.xpose.msra.mxu0 0.0
        %350 = vmatprep.subr.mxu0 0.0
        %351 = vmatpush1.xpose.msra.mxu0 0.0
        %352 = vmatprep.subr.mxu0 0.0
        %353 = vmatpush1.xpose.msra.mxu0 0.0
        %354 = vmatprep.mubr.f32.mxu0 0.0
        %v355 = vand.u32 %v287, 4294901760
        %v356 = vsub.f32 %v287, %v355
        %v357 = vand.u32 %v356, 4294901760
        %v358 = vsub.f32 %v356, %v357
        %v359 = vand.u32 %v358, 4294901760
        %360 = vmatmul.mubr.f32.gmra.mrb[0].mxu0 %v359
        %v361 = vpop.f32.mrb[0].mxu0
        %v362 = vadd.f32 0.0, %v361
        %v363 = vpop.f32.mrb[0].mxu0
        %364 = vdwg.mxu0
        %365 = vmatprep.subr.mxu0 0.0
        %v366 = vand.u32 %v277, 4294901760
        %v367 = vsub.f32 %v277, %v366
        %v368 = vand.u32 %v367, 4294901760
        %v369 = vsub.f32 %v367, %v368
        %v370 = vand.u32 %v369, 4294901760
        %371 = vmatpush1.xpose.msra.mxu0 %v370
        %372 = vmatprep.subr.mxu0 0.0
        %373 = vmatpush1.xpose.msra.mxu0 0.0
        %374 = vmatprep.subr.mxu0 0.0
        %375 = vmatpush1.xpose.msra.mxu0 0.0
        %376 = vmatprep.subr.mxu0 0.0
        %377 = vmatpush1.xpose.msra.mxu0 0.0
        %378 = vmatprep.subr.mxu0 0.0
        %379 = vmatpush1.xpose.msra.mxu0 0.0
        %380 = vmatprep.subr.mxu0 0.0
        %381 = vmatpush1.xpose.msra.mxu0 0.0
        %382 = vmatprep.subr.mxu0 0.0
        %383 = vmatpush1.xpose.msra.mxu0 0.0
        %384 = vmatprep.subr.mxu0 0.0
        %385 = vmatpush1.xpose.msra.mxu0 0.0
        %386 = vmatprep.subr.mxu0 0.0
        %387 = vmatpush1.xpose.msra.mxu0 0.0
        %388 = vmatprep.subr.mxu0 0.0
        %389 = vmatpush1.xpose.msra.mxu0 0.0
        %390 = vmatprep.subr.mxu0 0.0
        %391 = vmatpush1.xpose.msra.mxu0 0.0
        %392 = vmatprep.subr.mxu0 0.0
        %393 = vmatpush1.xpose.msra.mxu0 0.0
        %394 = vmatprep.subr.mxu0 0.0
        %395 = vmatpush1.xpose.msra.mxu0 0.0
        %396 = vmatprep.subr.mxu0 0.0
        %397 = vmatpush1.xpose.msra.mxu0 0.0
        %398 = vmatprep.subr.mxu0 0.0
        %399 = vmatpush1.xpose.msra.mxu0 0.0
        %400 = vmatprep.subr.mxu0 0.0
        %401 = vmatpush1.xpose.msra.mxu0 0.0
        %402 = vmatprep.subr.mxu0 0.0
        %403 = vmatpush1.xpose.msra.mxu0 0.0
        %404 = vmatprep.subr.mxu0 0.0
        %405 = vmatpush1.xpose.msra.mxu0 0.0
        %406 = vmatprep.subr.mxu0 0.0
        %407 = vmatpush1.xpose.msra.mxu0 0.0
        %408 = vmatprep.subr.mxu0 0.0
        %409 = vmatpush1.xpose.msra.mxu0 0.0
        %410 = vmatprep.subr.mxu0 0.0
        %411 = vmatpush1.xpose.msra.mxu0 0.0
        %412 = vmatprep.subr.mxu0 0.0
        %413 = vmatpush1.xpose.msra.mxu0 0.0
        %414 = vmatprep.subr.mxu0 0.0
        %415 = vmatpush1.xpose.msra.mxu0 0.0
        %416 = vmatprep.subr.mxu0 0.0
        %417 = vmatpush1.xpose.msra.mxu0 0.0
        %418 = vmatprep.subr.mxu0 0.0
        %419 = vmatpush1.xpose.msra.mxu0 0.0
        %420 = vmatprep.subr.mxu0 0.0
        %421 = vmatpush1.xpose.msra.mxu0 0.0
        %422 = vmatprep.subr.mxu0 0.0
        %423 = vmatpush1.xpose.msra.mxu0 0.0
        %424 = vmatprep.subr.mxu0 0.0
        %425 = vmatpush1.xpose.msra.mxu0 0.0
        %426 = vmatprep.subr.mxu0 0.0
        %427 = vmatpush1.xpose.msra.mxu0 0.0
        %428 = vmatprep.subr.mxu0 0.0
        %429 = vmatpush1.xpose.msra.mxu0 0.0
        %430 = vmatprep.subr.mxu0 0.0
        %431 = vmatpush1.xpose.msra.mxu0 0.0
        %432 = vmatprep.subr.mxu0 0.0
        %433 = vmatpush1.xpose.msra.mxu0 0.0
        %434 = vmatprep.mubr.f32.mxu0 0.0
        %v435 = vand.u32 %v287, 4294901760
        %436 = vmatmul.mubr.f32.gmra.mrb[0].mxu0 %v435
        %v437 = vpop.f32.mrb[0].mxu0
        %v438 = vadd.f32 %v362, %v437
        %v439 = vpop.f32.mrb[0].mxu0
        %440 = vdwg.mxu0
        %441 = vmatprep.subr.mxu0 0.0
        %v442 = vand.u32 %v277, 4294901760
        %v443 = vsub.f32 %v277, %v442
        %444 = vmatpush1.xpose.msra.mxu0 %v443
        %445 = vmatprep.subr.mxu0 0.0
        %446 = vmatpush1.xpose.msra.mxu0 0.0
        %447 = vmatprep.subr.mxu0 0.0
        %448 = vmatpush1.xpose.msra.mxu0 0.0
        %449 = vmatprep.subr.mxu0 0.0
        %450 = vmatpush1.xpose.msra.mxu0 0.0
        %451 = vmatprep.subr.mxu0 0.0
        %452 = vmatpush1.xpose.msra.mxu0 0.0
        %453 = vmatprep.subr.mxu0 0.0
        %454 = vmatpush1.xpose.msra.mxu0 0.0
        %455 = vmatprep.subr.mxu0 0.0
        %456 = vmatpush1.xpose.msra.mxu0 0.0
        %457 = vmatprep.subr.mxu0 0.0
        %458 = vmatpush1.xpose.msra.mxu0 0.0
        %459 = vmatprep.subr.mxu0 0.0
        %460 = vmatpush1.xpose.msra.mxu0 0.0
        %461 = vmatprep.subr.mxu0 0.0
        %462 = vmatpush1.xpose.msra.mxu0 0.0
        %463 = vmatprep.subr.mxu0 0.0
        %464 = vmatpush1.xpose.msra.mxu0 0.0
        %465 = vmatprep.subr.mxu0 0.0
        %466 = vmatpush1.xpose.msra.mxu0 0.0
        %467 = vmatprep.subr.mxu0 0.0
        %468 = vmatpush1.xpose.msra.mxu0 0.0
        %469 = vmatprep.subr.mxu0 0.0
        %470 = vmatpush1.xpose.msra.mxu0 0.0
        %471 = vmatprep.subr.mxu0 0.0
        %472 = vmatpush1.xpose.msra.mxu0 0.0
        %473 = vmatprep.subr.mxu0 0.0
        %474 = vmatpush1.xpose.msra.mxu0 0.0
        %475 = vmatprep.subr.mxu0 0.0
        %476 = vmatpush1.xpose.msra.mxu0 0.0
        %477 = vmatprep.subr.mxu0 0.0
        %478 = vmatpush1.xpose.msra.mxu0 0.0
        %479 = vmatprep.subr.mxu0 0.0
        %480 = vmatpush1.xpose.msra.mxu0 0.0
        %481 = vmatprep.subr.mxu0 0.0
        %482 = vmatpush1.xpose.msra.mxu0 0.0
        %483 = vmatprep.subr.mxu0 0.0
        %484 = vmatpush1.xpose.msra.mxu0 0.0
        %485 = vmatprep.subr.mxu0 0.0
        %486 = vmatpush1.xpose.msra.mxu0 0.0
        %487 = vmatprep.subr.mxu0 0.0
        %488 = vmatpush1.xpose.msra.mxu0 0.0
        %489 = vmatprep.subr.mxu0 0.0
        %490 = vmatpush1.xpose.msra.mxu0 0.0
        %491 = vmatprep.subr.mxu0 0.0
        %492 = vmatpush1.xpose.msra.mxu0 0.0
        %493 = vmatprep.subr.mxu0 0.0
        %494 = vmatpush1.xpose.msra.mxu0 0.0
        %495 = vmatprep.subr.mxu0 0.0
        %496 = vmatpush1.xpose.msra.mxu0 0.0
        %497 = vmatprep.subr.mxu0 0.0
        %498 = vmatpush1.xpose.msra.mxu0 0.0
        %499 = vmatprep.subr.mxu0 0.0
        %500 = vmatpush1.xpose.msra.mxu0 0.0
        %501 = vmatprep.subr.mxu0 0.0
        %502 = vmatpush1.xpose.msra.mxu0 0.0
        %503 = vmatprep.subr.mxu0 0.0
        %504 = vmatpush1.xpose.msra.mxu0 0.0
        %505 = vmatprep.subr.mxu0 0.0
        %506 = vmatpush1.xpose.msra.mxu0 0.0
        %507 = vmatprep.mubr.f32.mxu0 0.0
        %v508 = vand.u32 %v287, 4294901760
        %v509 = vsub.f32 %v287, %v508
        %510 = vmatmul.mubr.f32.gmra.mrb[0].mxu0 %v509
        %v511 = vpop.f32.mrb[0].mxu0
        %v512 = vadd.f32 %v438, %v511
        %v513 = vpop.f32.mrb[0].mxu0
        %514 = vdwg.mxu0
        %515 = vmatprep.subr.mxu0 0.0
        %v516 = vand.u32 %v277, 4294901760
        %517 = vmatpush1.xpose.msra.mxu0 %v516
        %518 = vmatprep.subr.mxu0 0.0
        %519 = vmatpush1.xpose.msra.mxu0 0.0
        %520 = vmatprep.subr.mxu0 0.0
        %521 = vmatpush1.xpose.msra.mxu0 0.0
        %522 = vmatprep.subr.mxu0 0.0
        %523 = vmatpush1.xpose.msra.mxu0 0.0
        %524 = vmatprep.subr.mxu0 0.0
        %525 = vmatpush1.xpose.msra.mxu0 0.0
        %526 = vmatprep.subr.mxu0 0.0
        %527 = vmatpush1.xpose.msra.mxu0 0.0
        %528 = vmatprep.subr.mxu0 0.0
        %529 = vmatpush1.xpose.msra.mxu0 0.0
        %530 = vmatprep.subr.mxu0 0.0
        %531 = vmatpush1.xpose.msra.mxu0 0.0
        %532 = vmatprep.subr.mxu0 0.0
        %533 = vmatpush1.xpose.msra.mxu0 0.0
        %534 = vmatprep.subr.mxu0 0.0
        %535 = vmatpush1.xpose.msra.mxu0 0.0
        %536 = vmatprep.subr.mxu0 0.0
        %537 = vmatpush1.xpose.msra.mxu0 0.0
        %538 = vmatprep.subr.mxu0 0.0
        %539 = vmatpush1.xpose.msra.mxu0 0.0
        %540 = vmatprep.subr.mxu0 0.0
        %541 = vmatpush1.xpose.msra.mxu0 0.0
        %542 = vmatprep.subr.mxu0 0.0
        %543 = vmatpush1.xpose.msra.mxu0 0.0
        %544 = vmatprep.subr.mxu0 0.0
        %545 = vmatpush1.xpose.msra.mxu0 0.0
        %546 = vmatprep.subr.mxu0 0.0
        %547 = vmatpush1.xpose.msra.mxu0 0.0
        %548 = vmatprep.subr.mxu0 0.0
        %549 = vmatpush1.xpose.msra.mxu0 0.0
        %550 = vmatprep.subr.mxu0 0.0
        %551 = vmatpush1.xpose.msra.mxu0 0.0
        %552 = vmatprep.subr.mxu0 0.0
        %553 = vmatpush1.xpose.msra.mxu0 0.0
        %554 = vmatprep.subr.mxu0 0.0
        %555 = vmatpush1.xpose.msra.mxu0 0.0
        %556 = vmatprep.subr.mxu0 0.0
        %557 = vmatpush1.xpose.msra.mxu0 0.0
        %558 = vmatprep.subr.mxu0 0.0
        %559 = vmatpush1.xpose.msra.mxu0 0.0
        %560 = vmatprep.subr.mxu0 0.0
        %561 = vmatpush1.xpose.msra.mxu0 0.0
        %562 = vmatprep.subr.mxu0 0.0
        %563 = vmatpush1.xpose.msra.mxu0 0.0
        %564 = vmatprep.subr.mxu0 0.0
        %565 = vmatpush1.xpose.msra.mxu0 0.0
        %566 = vmatprep.subr.mxu0 0.0
        %567 = vmatpush1.xpose.msra.mxu0 0.0
        %568 = vmatprep.subr.mxu0 0.0
        %569 = vmatpush1.xpose.msra.mxu0 0.0
        %570 = vmatprep.subr.mxu0 0.0
        %571 = vmatpush1.xpose.msra.mxu0 0.0
        %572 = vmatprep.subr.mxu0 0.0
        %573 = vmatpush1.xpose.msra.mxu0 0.0
        %574 = vmatprep.subr.mxu0 0.0
        %575 = vmatpush1.xpose.msra.mxu0 0.0
        %576 = vmatprep.subr.mxu0 0.0
        %577 = vmatpush1.xpose.msra.mxu0 0.0
        %578 = vmatprep.subr.mxu0 0.0
        %579 = vmatpush1.xpose.msra.mxu0 0.0
        %580 = vmatprep.mubr.f32.mxu0 0.0
        %v581 = vand.u32 %v287, 4294901760
        %v582 = vsub.f32 %v287, %v581
        %v583 = vand.u32 %v582, 4294901760
        %584 = vmatmul.mubr.f32.gmra.mrb[0].mxu0 %v583
        %v585 = vpop.f32.mrb[0].mxu0
        %v586 = vadd.f32 %v512, %v585
        %v587 = vpop.f32.mrb[0].mxu0
        %588 = vdwg.mxu0
        %589 = vmatprep.subr.mxu0 0.0
        %v590 = vand.u32 %v277, 4294901760
        %v591 = vsub.f32 %v277, %v590
        %v592 = vand.u32 %v591, 4294901760
        %593 = vmatpush1.xpose.msra.mxu0 %v592
        %594 = vmatprep.subr.mxu0 0.0
        %595 = vmatpush1.xpose.msra.mxu0 0.0
        %596 = vmatprep.subr.mxu0 0.0
        %597 = vmatpush1.xpose.msra.mxu0 0.0
        %598 = vmatprep.subr.mxu0 0.0
        %599 = vmatpush1.xpose.msra.mxu0 0.0
        %600 = vmatprep.subr.mxu0 0.0
        %601 = vmatpush1.xpose.msra.mxu0 0.0
        %602 = vmatprep.subr.mxu0 0.0
        %603 = vmatpush1.xpose.msra.mxu0 0.0
        %604 = vmatprep.subr.mxu0 0.0
        %605 = vmatpush1.xpose.msra.mxu0 0.0
        %606 = vmatprep.subr.mxu0 0.0
        %607 = vmatpush1.xpose.msra.mxu0 0.0
        %608 = vmatprep.subr.mxu0 0.0
        %609 = vmatpush1.xpose.msra.mxu0 0.0
        %610 = vmatprep.subr.mxu0 0.0
        %611 = vmatpush1.xpose.msra.mxu0 0.0
        %612 = vmatprep.subr.mxu0 0.0
        %613 = vmatpush1.xpose.msra.mxu0 0.0
        %614 = vmatprep.subr.mxu0 0.0
        %615 = vmatpush1.xpose.msra.mxu0 0.0
        %616 = vmatprep.subr.mxu0 0.0
        %617 = vmatpush1.xpose.msra.mxu0 0.0
        %618 = vmatprep.subr.mxu0 0.0
        %619 = vmatpush1.xpose.msra.mxu0 0.0
        %620 = vmatprep.subr.mxu0 0.0
        %621 = vmatpush1.xpose.msra.mxu0 0.0
        %622 = vmatprep.subr.mxu0 0.0
        %623 = vmatpush1.xpose.msra.mxu0 0.0
        %624 = vmatprep.subr.mxu0 0.0
        %625 = vmatpush1.xpose.msra.mxu0 0.0
        %626 = vmatprep.subr.mxu0 0.0
        %627 = vmatpush1.xpose.msra.mxu0 0.0
        %628 = vmatprep.subr.mxu0 0.0
        %629 = vmatpush1.xpose.msra.mxu0 0.0
        %630 = vmatprep.subr.mxu0 0.0
        %631 = vmatpush1.xpose.msra.mxu0 0.0
        %632 = vmatprep.subr.mxu0 0.0
        %633 = vmatpush1.xpose.msra.mxu0 0.0
        %634 = vmatprep.subr.mxu0 0.0
        %635 = vmatpush1.xpose.msra.mxu0 0.0
        %636 = vmatprep.subr.mxu0 0.0
        %637 = vmatpush1.xpose.msra.mxu0 0.0
        %638 = vmatprep.subr.mxu0 0.0
        %639 = vmatpush1.xpose.msra.mxu0 0.0
        %640 = vmatprep.subr.mxu0 0.0
        %641 = vmatpush1.xpose.msra.mxu0 0.0
        %642 = vmatprep.subr.mxu0 0.0
        %643 = vmatpush1.xpose.msra.mxu0 0.0
        %644 = vmatprep.subr.mxu0 0.0
        %645 = vmatpush1.xpose.msra.mxu0 0.0
        %646 = vmatprep.subr.mxu0 0.0
        %647 = vmatpush1.xpose.msra.mxu0 0.0
        %648 = vmatprep.subr.mxu0 0.0
        %649 = vmatpush1.xpose.msra.mxu0 0.0
        %650 = vmatprep.subr.mxu0 0.0
        %651 = vmatpush1.xpose.msra.mxu0 0.0
        %652 = vmatprep.subr.mxu0 0.0
        %653 = vmatpush1.xpose.msra.mxu0 0.0
        %654 = vmatprep.subr.mxu0 0.0
        %655 = vmatpush1.xpose.msra.mxu0 0.0
        %656 = vmatprep.mubr.f32.mxu0 0.0
        %v657 = vand.u32 %v287, 4294901760
        %658 = vmatmul.mubr.f32.gmra.mrb[0].mxu0 %v657
        %v659 = vpop.f32.mrb[0].mxu0
        %v660 = vadd.f32 %v586, %v659
        %v661 = vpop.f32.mrb[0].mxu0
        %662 = vdwg.mxu0
        %663 = vmatprep.subr.mxu0 0.0
        %v664 = vand.u32 %v277, 4294901760
        %665 = vmatpush1.xpose.msra.mxu0 %v664
        %666 = vmatprep.subr.mxu0 0.0
        %667 = vmatpush1.xpose.msra.mxu0 0.0
        %668 = vmatprep.subr.mxu0 0.0
        %669 = vmatpush1.xpose.msra.mxu0 0.0
        %670 = vmatprep.subr.mxu0 0.0
        %671 = vmatpush1.xpose.msra.mxu0 0.0
        %672 = vmatprep.subr.mxu0 0.0
        %673 = vmatpush1.xpose.msra.mxu0 0.0
        %674 = vmatprep.subr.mxu0 0.0
        %675 = vmatpush1.xpose.msra.mxu0 0.0
        %676 = vmatprep.subr.mxu0 0.0
        %677 = vmatpush1.xpose.msra.mxu0 0.0
        %678 = vmatprep.subr.mxu0 0.0
        %679 = vmatpush1.xpose.msra.mxu0 0.0
        %680 = vmatprep.subr.mxu0 0.0
        %681 = vmatpush1.xpose.msra.mxu0 0.0
        %682 = vmatprep.subr.mxu0 0.0
        %683 = vmatpush1.xpose.msra.mxu0 0.0
        %684 = vmatprep.subr.mxu0 0.0
        %685 = vmatpush1.xpose.msra.mxu0 0.0
        %686 = vmatprep.subr.mxu0 0.0
        %687 = vmatpush1.xpose.msra.mxu0 0.0
        %688 = vmatprep.subr.mxu0 0.0
        %689 = vmatpush1.xpose.msra.mxu0 0.0
        %690 = vmatprep.subr.mxu0 0.0
        %691 = vmatpush1.xpose.msra.mxu0 0.0
        %692 = vmatprep.subr.mxu0 0.0
        %693 = vmatpush1.xpose.msra.mxu0 0.0
        %694 = vmatprep.subr.mxu0 0.0
        %695 = vmatpush1.xpose.msra.mxu0 0.0
        %696 = vmatprep.subr.mxu0 0.0
        %697 = vmatpush1.xpose.msra.mxu0 0.0
        %698 = vmatprep.subr.mxu0 0.0
        %699 = vmatpush1.xpose.msra.mxu0 0.0
        %700 = vmatprep.subr.mxu0 0.0
        %701 = vmatpush1.xpose.msra.mxu0 0.0
        %702 = vmatprep.subr.mxu0 0.0
        %703 = vmatpush1.xpose.msra.mxu0 0.0
        %704 = vmatprep.subr.mxu0 0.0
        %705 = vmatpush1.xpose.msra.mxu0 0.0
        %706 = vmatprep.subr.mxu0 0.0
        %707 = vmatpush1.xpose.msra.mxu0 0.0
        %708 = vmatprep.subr.mxu0 0.0
        %709 = vmatpush1.xpose.msra.mxu0 0.0
        %710 = vmatprep.subr.mxu0 0.0
        %711 = vmatpush1.xpose.msra.mxu0 0.0
        %712 = vmatprep.subr.mxu0 0.0
        %713 = vmatpush1.xpose.msra.mxu0 0.0
        %714 = vmatprep.subr.mxu0 0.0
        %715 = vmatpush1.xpose.msra.mxu0 0.0
        %716 = vmatprep.subr.mxu0 0.0
        %717 = vmatpush1.xpose.msra.mxu0 0.0
        %718 = vmatprep.subr.mxu0 0.0
        %719 = vmatpush1.xpose.msra.mxu0 0.0
        %720 = vmatprep.subr.mxu0 0.0
        %721 = vmatpush1.xpose.msra.mxu0 0.0
        %722 = vmatprep.subr.mxu0 0.0
        %723 = vmatpush1.xpose.msra.mxu0 0.0
        %724 = vmatprep.subr.mxu0 0.0
        %725 = vmatpush1.xpose.msra.mxu0 0.0
        %726 = vmatprep.subr.mxu0 0.0
        %727 = vmatpush1.xpose.msra.mxu0 0.0
        %728 = vmatprep.mubr.f32.mxu0 0.0
        %v729 = vand.u32 %v287, 4294901760
        %730 = vmatmul.mubr.f32.gmra.mrb[0].mxu0 %v729
        %v731 = vpop.f32.mrb[0].mxu0
        %v732 = vadd.f32 %v660, %v731
        %v733 = vpop.f32.mrb[0].mxu0
        %734 = vdwg.mxu0
        %v735 = vadd.f32 %v288, %v732
        %vm736 = vcmask 27648
        %737 = vst.msk [vmem:[#allocation2] sm:$0xf] %vm736, %v735
        %p738 = scmp.eq.s32.totalorder %s28, 1
        // Predicated region
        $region45: #{tpu_custom_call.1} parent=31 // pred_check
          %p739 = pneg %p738
        $region46: #{tpu_custom_call.1} parent=31 // pred_check_branch
          %741 = sbr.rel (%p739) target = $region48
        $region47: #{tpu_custom_call.1} parent=31 // pred_region
          %v742 = vld [vmem:[%s2] sm:$0xf]
          %v743 = vld [vmem:[#allocation2] sm:$0xf]
          %v744 = vmul.f32 %v742, %v743
          %v745 = vsel %vm736, %v744, 0.0
          %746 = vadd.xlane.f32.xlu0 %v745
          %v747 = vpop.xlane.xlu0 %746
          %v748 = vrot.slane %v747, 4
          %v749 = vadd.f32 %v747, %v748
          %v750 = vrot.slane %v749, 2
          %v751 = vadd.f32 %v749, %v750
          %v752 = vrot.slane %v751, 1
          %v753 = vadd.f32 %v751, %v752
          %s754 = vtos %v753
          %v755 = vstv %s754
          %v756 = vadd.f32 %v755, 0.0
          %757 = vst [vmem:[%s243] sm:$0xff] %v756
        $region48: #{tpu_custom_call.1} parent=31 // pred_fallthru
          _
        %s758 = sand.u32 %s124, 1
        %s759 = scalar_lea.sflag [#allocation5], %s758
        %s760 = sand.u32 %s124, 1
        %s761 = smul.addr %s760, 8
        %s762 = scalar_lea.vmem [#allocation8], %s761
        // Predicated region
        $region49: #{tpu_custom_call.1} parent=31 // pred_check
          %p763 = pneg %p134
        $region50: #{tpu_custom_call.1} parent=31 // pred_check_branch
          %765 = sbr.rel (%p763) target = $region52
        $region51: #{tpu_custom_call.1} parent=31 // pred_region
          %s767 = ssub.s32 128, 128
          %768 = vsyncadd %s759, %s767
          %s769 = smul.addr %s27, 128
          %s770 = scalar_lea.hbm %s3, %s769
          %s772 = sshll.u32 %s762, 4
          %s773 = int_to_ptr.vmem [resolvable:$true] %s772
          %775 = dma.vmem_to_hbm [thread:$0]  %s773, 128, %s770, %s759
        $region52: #{tpu_custom_call.1} parent=31 // pred_fallthru
          _
      $region32: #{tpu_custom_call.1} parent=5 // pred_fallthru
        _
      %p776 = scmp.le.s32.totalorder 2, %s18
      // Predicated region
      $region53: #{tpu_custom_call.1} parent=5 // pred_check
        %p777 = pneg %p776
      $region54: #{tpu_custom_call.1} parent=5 // pred_check_branch
        %779 = sbr.rel (%p777) target = $region56
      $region55: #{tpu_custom_call.1} parent=5 // pred_region
        %s780 = ssub.s32 %s18, 2
        // Predicated region
        $region57: #{tpu_custom_call.1} parent=55 // pred_check
          %p781 = pneg %p140
        $region58: #{tpu_custom_call.1} parent=55 // pred_check_branch
          %783 = sbr.rel (%p781) target = $region60
        $region59: #{tpu_custom_call.1} parent=55 // pred_region
          %s784 = sand.u32 %s125, 1
          %s785 = scalar_lea.sflag [#allocation5], %s784
          %s786 = sand.u32 %s125, 1
          %s787 = smul.addr %s786, 8
          %s788 = scalar_lea.vmem [#allocation8], %s787
          %789 = dma.done %s785, 128
        $region60: #{tpu_custom_call.1} parent=55 // pred_fallthru
          _
      $region56: #{tpu_custom_call.1} parent=5 // pred_fallthru
        _
    $region6: #{tpu_custom_call.1} parent=1 // loop_footer
      %s22 = sadd.s32 1, %s18
    $region7: #{tpu_custom_call.1} parent=1 // loop_footer_branch
      %17 = sbr.rel target = $region3
    $region8: #{tpu_custom_call.1} parent=1 // loop_exit
      _
    %790 = vsyncpa [#allocation4], 1
    %s791 = scalar_lea.sflag [#allocation4], 1
    %792 = vsyncpa %s791, 1
    %793 = vsyncpa [#allocation7], 1
    %s794 = scalar_lea.sflag [#allocation7], 1
    %795 = vsyncpa %s794, 1
    %796 = vsyncpa [#allocation5], 1
    %s797 = scalar_lea.sflag [#allocation5], 1
    %798 = vsyncpa %s797, 1

</llo_original>
